<compile_context>
chip_gen: v6e
topology: v6e:2x2x1
jax: 0.10.0
libtpu: 0.0.40
codegen_flags: <defaults>
</compile_context>

<pallas_src>
import functools
import math

import jax
import jax.numpy as jnp
from jax.experimental import pallas as pl
from jax.experimental.pallas import tpu as pltpu

LOG_MAX_STD = 2.0
LOG_MIN_STD = -20.0
EPS = 1e-8
LOG_2PI = math.log(2.0 * math.pi)


def _round_up(x, m):
    return ((x + m - 1) // m) * m


def _svae_decoder_kernel(x_ref, w1_ref, w2_ref, wh_ref, b_ref, out_ref,
                         *, latent_dim, obs_dim, h0, h1):
    x = x_ref[...]                                   # [TB, 256] f32
    latent = x[:, :latent_dim]                       # lane-0 aligned slice
    ref_obs = x[:, 128:128 + obs_dim]                # 128-lane aligned slice

    # --- MLP trunk: bf16 MXU operands, f32 accumulation; only the bf16
    #     activation stays live into the next matmul (vreg-pressure control). ---
    h = jnp.dot(latent.astype(jnp.bfloat16), w1_ref[...],
                preferred_element_type=jnp.float32) + b_ref[0:1, :h0]
    h = jnp.maximum(h, 0.0).astype(jnp.bfloat16)
    h = jnp.dot(h, w2_ref[...],
                preferred_element_type=jnp.float32) + b_ref[1:2, :h1]
    h = jnp.maximum(h, 0.0).astype(jnp.bfloat16)

    # --- fused heads: one matmul producing [mu | pad | log_std | pad], with mu
    #     starting at lane 0 and log_std at lane 128 (both vreg-aligned). ---
    head_w = wh_ref.shape[1]
    heads = jnp.dot(h, wh_ref[...],
                    preferred_element_type=jnp.float32) + b_ref[2:3, :head_w]
    mu = heads[:, :obs_dim]
    log_std = jnp.clip(heads[:, 128:128 + obs_dim], LOG_MIN_STD, LOG_MAX_STD)
    std = jnp.exp(log_std)

    # --- gaussian_likelihood(ref_obs, mu, log_std) ---
    inv = pl.reciprocal(std + EPS, approx=True)      # EUP vrcp, VALU slot free
    z = (ref_obs - mu) * inv
    pre_sum = -0.5 * (z * z + 2.0 * log_std + LOG_2PI)
    lik = jnp.mean(pre_sum, axis=-1, keepdims=True)  # [TB, 1]

    # --- single lane-dense unmasked store: [mu | std | lik | zero pad] ---
    pad = jnp.zeros((x.shape[0], out_ref.shape[1] - (2 * obs_dim + 1)),
                    jnp.float32)
    out_ref[...] = jnp.concatenate([mu, std, lik, pad], axis=1)


def svae_decoder_forward(latent, ref_obs, params, *, block_b=128):
    """SVAEDecoder forward (with ref_obs) as one Pallas kernel call."""
    B, latent_dim = latent.shape
    obs_dim = ref_obs.shape[1]
    H0 = params["w1"].shape[1]
    H1 = params["w2"].shape[1]
    assert latent_dim <= 128 and obs_dim <= 128, "packing assumes <=128 lanes"

    # Batch tiling.  For B >= 16 force >= 2 grid steps so both v7x TensorCores
    # get work; at the production B=8 case this stays grid=(1,).
    if B >= 16:
        TB = min(_round_up(-(-B // 2), 8), block_b)
    else:
        TB = _round_up(B, 8)
    Bp = _round_up(B, TB)

    # Packed, 128-lane-aligned input: latent at lanes [0, latent_dim),
    # ref_obs at lanes [128, 128 + obs_dim).
    x_in = jnp.zeros((Bp, 256), jnp.float32)
    x_in = x_in.at[:B, :latent_dim].set(latent.astype(jnp.float32))
    x_in = x_in.at[:B, 128:128 + obs_dim].set(ref_obs.astype(jnp.float32))

    w1 = params["w1"].astype(jnp.bfloat16)
    w2 = params["w2"].astype(jnp.bfloat16)

    # Fused, 128-aligned head weight: wmu at cols [0, obs), wls at [128, 128+obs).
    w_head = jnp.zeros((H1, 256), jnp.bfloat16)
    w_head = w_head.at[:, :obs_dim].set(params["wmu"].astype(jnp.bfloat16))
    w_head = w_head.at[:, 128:128 + obs_dim].set(params["wls"].astype(jnp.bfloat16))

    # All biases in one padded array (rows: b1, b2, head bias in head layout).
    BW = _round_up(max(H0, H1, 256), 128)
    b_all = jnp.zeros((3, BW), jnp.float32)
    b_all = b_all.at[0, :H0].set(params["b1"].reshape(-1).astype(jnp.float32))
    b_all = b_all.at[1, :H1].set(params["b2"].reshape(-1).astype(jnp.float32))
    b_all = b_all.at[2, :obs_dim].set(params["bmu"].reshape(-1).astype(jnp.float32))
    b_all = b_all.at[2, 128:128 + obs_dim].set(
        params["bls"].reshape(-1).astype(jnp.float32))

    OUT_W = _round_up(2 * obs_dim + 1, 128)

    kernel = functools.partial(_svae_decoder_kernel, latent_dim=latent_dim,
                               obs_dim=obs_dim, h0=H0, h1=H1)

    out = pl.pallas_call(
        kernel,
        out_shape=jax.ShapeDtypeStruct((Bp, OUT_W), jnp.float32),
        grid=(Bp // TB,),
        in_specs=[
            pl.BlockSpec((TB, 256), lambda i: (i, 0)),
            pl.BlockSpec((latent_dim, H0), lambda i: (0, 0)),
            pl.BlockSpec((H0, H1), lambda i: (0, 0)),
            pl.BlockSpec((H1, 256), lambda i: (0, 0)),
            pl.BlockSpec((3, BW), lambda i: (0, 0)),
        ],
        out_specs=pl.BlockSpec((TB, OUT_W), lambda i: (i, 0)),
        compiler_params=pltpu.CompilerParams(
            dimension_semantics=("parallel",)),
    )(x_in, w1, w2, w_head, b_all)

    out = out[:B]
    mu = out[:, :obs_dim]
    std = out[:, obs_dim:2 * obs_dim]
    lik = out[:, 2 * obs_dim]
    # TODO(synk): for the latency-bound production B=8 case, fuse multiple
    # decoder invocations into one call (extra batch axis) or prefetch the
    # ~160 KiB of weights across calls to amortize the fixed DMA/call overhead.
    return mu, std, lik


def init_params(key, latent_dim, obs_dim, hidden_sizes=(256, 256)):
    """Deterministic synthetic parameters (PyTorch-Linear shapes, transposed)."""
    sizes = [latent_dim] + list(hidden_sizes)
    keys = jax.random.split(key, 8)
    params = {}
    params["w1"] = jax.random.normal(keys[0], (sizes[0], sizes[1]), jnp.float32) / jnp.sqrt(sizes[0])
    params["b1"] = jax.random.normal(keys[1], (1, sizes[1]), jnp.float32) * 0.01
    params["w2"] = jax.random.normal(keys[2], (sizes[1], sizes[2]), jnp.float32) / jnp.sqrt(sizes[1])
    params["b2"] = jax.random.normal(keys[3], (1, sizes[2]), jnp.float32) * 0.01
    params["wmu"] = jax.random.normal(keys[4], (sizes[2], obs_dim), jnp.float32) / jnp.sqrt(sizes[2])
    params["bmu"] = jax.random.normal(keys[5], (1, obs_dim), jnp.float32) * 0.01
    params["wls"] = jax.random.normal(keys[6], (sizes[2], obs_dim), jnp.float32) / jnp.sqrt(sizes[2])
    params["bls"] = jax.random.normal(keys[7], (1, obs_dim), jnp.float32) * 0.01
    return params


def reference_forward(latent, ref_obs, params):
    """Pure-JAX reference mirroring the PyTorch module (bf16 MXU operands,
    f32 accumulation & elementwise — same math as the kernel)."""
    bf = jnp.bfloat16
    f32 = jnp.float32
    h = jnp.maximum(jnp.dot(latent.astype(bf), params["w1"].astype(bf),
                            preferred_element_type=f32) + params["b1"], 0.0)
    h = jnp.maximum(jnp.dot(h.astype(bf), params["w2"].astype(bf),
                            preferred_element_type=f32) + params["b2"], 0.0)
    mu = jnp.dot(h.astype(bf), params["wmu"].astype(bf),
                 preferred_element_type=f32) + params["bmu"]
    log_std = jnp.dot(h.astype(bf), params["wls"].astype(bf),
                      preferred_element_type=f32) + params["bls"]
    log_std = jnp.clip(log_std, LOG_MIN_STD, LOG_MAX_STD)
    std = jnp.exp(log_std)
    pre_sum = -0.5 * (((ref_obs - mu) / (std + EPS)) ** 2 + 2.0 * log_std + LOG_2PI)
    return mu, std, jnp.mean(pre_sum, axis=-1)


def _check(batch, latent_dim, obs_dim, hidden_sizes, key):
    k_lat, k_obs, k_par = jax.random.split(key, 3)
    latent = jax.random.normal(k_lat, (batch, latent_dim), jnp.float32)
    ref_obs = jax.random.normal(k_obs, (batch, obs_dim), jnp.float32)
    params = init_params(k_par, latent_dim, obs_dim, hidden_sizes)

    mu, std, likelihood = svae_decoder_forward(latent, ref_obs, params)
    jax.block_until_ready((mu, std, likelihood))

    mu_ref, std_ref, lik_ref = reference_forward(latent, ref_obs, params)
    assert mu.shape == (batch, obs_dim)
    assert std.shape == (batch, obs_dim)
    assert likelihood.shape == (batch,)
    assert jnp.allclose(mu, mu_ref, atol=2e-3, rtol=2e-3)
    assert jnp.allclose(std, std_ref, atol=2e-3, rtol=2e-3)
    assert jnp.allclose(likelihood, lik_ref, atol=2e-3, rtol=2e-3)


if __name__ == "__main__":
    key = jax.random.PRNGKey(0)
    k1, k2 = jax.random.split(key)

    # Production-like small batch (grid=(1,)).
    _check(batch=8, latent_dim=32, obs_dim=16, hidden_sizes=(256, 256), key=k1)
    # Larger batch exercising batch padding and the >=2-step grid path.
    _check(batch=24, latent_dim=32, obs_dim=16, hidden_sizes=(256, 256), key=k2)

    # TODO(synk): apply_squashing_func and the ref_obs=None branch (likelihood
    # = None) are not part of this forward path and are left to the caller.
    print("KERNEL_OK")
</pallas_src>

<mosaic_0001>
module attributes {stable_mosaic.version = 11 : i64} {
  func.func @_svae_decoder_kernel(%arg0: i32, %arg1: memref<8x256xf32, #tpu.memory_space<vmem>>, %arg2: memref<32x256xbf16, #tpu.memory_space<vmem>>, %arg3: memref<256x256xbf16, #tpu.memory_space<vmem>>, %arg4: memref<256x256xbf16, #tpu.memory_space<vmem>>, %arg5: memref<3x256xf32, #tpu.memory_space<vmem>>, %arg6: memref<8x128xf32, #tpu.memory_space<vmem>>) attributes {dimension_semantics = [#tpu.dimension_semantics<parallel>], iteration_bounds = array<i64: 1>, scalar_prefetch = 0 : i64, scratch_operands = 0 : i64, tpu.core_type = #tpu.core_type<tc>, window_params = [{transform_indices = @transform_0, window_bounds = array<i64: 8, 256>}, {pipeline_mode = #tpu.pipeline_mode<synchronous>, transform_indices = @transform_1, window_bounds = array<i64: 32, 256>}, {pipeline_mode = #tpu.pipeline_mode<synchronous>, transform_indices = @transform_2, window_bounds = array<i64: 256, 256>}, {pipeline_mode = #tpu.pipeline_mode<synchronous>, transform_indices = @transform_3, window_bounds = array<i64: 256, 256>}, {pipeline_mode = #tpu.pipeline_mode<synchronous>, transform_indices = @transform_4, window_bounds = array<i64: 3, 256>}, {transform_indices = @transform_5, window_bounds = array<i64: 8, 128>}]} {
    %c0 = arith.constant 0 : index
    %c0_0 = arith.constant 0 : index
    %0 = vector.load %arg1[%c0, %c0_0] : memref<8x256xf32, #tpu.memory_space<vmem>>, vector<8x256xf32>
    %1 = vector.extract_strided_slice %0 {offsets = [0, 0], sizes = [8, 32], strides = [1, 1]} : vector<8x256xf32> to vector<8x32xf32>
    %2 = vector.extract_strided_slice %0 {offsets = [0, 128], sizes = [8, 16], strides = [1, 1]} : vector<8x256xf32> to vector<8x16xf32>
    %3 = arith.truncf %1 : vector<8x32xf32> to vector<8x32xbf16>
    %c0_1 = arith.constant 0 : index
    %c0_2 = arith.constant 0 : index
    %4 = vector.load %arg2[%c0_1, %c0_2] : memref<32x256xbf16, #tpu.memory_space<vmem>>, vector<32x256xbf16>
    %cst = arith.constant dense<0.000000e+00> : vector<8x256xf32>
    %5 = tpu.matmul %3, %4, %cst {dimension_numbers = #tpu.dot_dimension_numbers<[1], [0], [0], [1], [0, 0, 1, 1], [], []>} : vector<8x32xbf16>, vector<32x256xbf16>, vector<8x256xf32> -> vector<8x256xf32>
    %c0_3 = arith.constant 0 : index
    %c0_4 = arith.constant 0 : index
    %6 = vector.load %arg5[%c0_3, %c0_4] : memref<3x256xf32, #tpu.memory_space<vmem>>, vector<1x256xf32>
    %7 = vector.broadcast %6 : vector<1x256xf32> to vector<8x256xf32>
    %8 = arith.addf %5, %7 : vector<8x256xf32>
    %cst_5 = arith.constant 0.000000e+00 : f32
    %9 = vector.broadcast %cst_5 : f32 to vector<8x256xf32>
    %10 = arith.maximumf %8, %9 : vector<8x256xf32>
    %11 = arith.truncf %10 : vector<8x256xf32> to vector<8x256xbf16>
    %c0_6 = arith.constant 0 : index
    %c0_7 = arith.constant 0 : index
    %12 = vector.load %arg3[%c0_6, %c0_7] : memref<256x256xbf16, #tpu.memory_space<vmem>>, vector<256x256xbf16>
    %cst_8 = arith.constant dense<0.000000e+00> : vector<8x256xf32>
    %13 = tpu.matmul %11, %12, %cst_8 {dimension_numbers = #tpu.dot_dimension_numbers<[1], [0], [0], [1], [0, 0, 1, 1], [], []>} : vector<8x256xbf16>, vector<256x256xbf16>, vector<8x256xf32> -> vector<8x256xf32>
    %c1 = arith.constant 1 : index
    %c0_9 = arith.constant 0 : index
    %14 = vector.load %arg5[%c1, %c0_9] : memref<3x256xf32, #tpu.memory_space<vmem>>, vector<1x256xf32>
    %15 = vector.broadcast %14 : vector<1x256xf32> to vector<8x256xf32>
    %16 = arith.addf %13, %15 : vector<8x256xf32>
    %cst_10 = arith.constant 0.000000e+00 : f32
    %17 = vector.broadcast %cst_10 : f32 to vector<8x256xf32>
    %18 = arith.maximumf %16, %17 : vector<8x256xf32>
    %19 = arith.truncf %18 : vector<8x256xf32> to vector<8x256xbf16>
    %c0_11 = arith.constant 0 : index
    %c0_12 = arith.constant 0 : index
    %20 = vector.load %arg4[%c0_11, %c0_12] : memref<256x256xbf16, #tpu.memory_space<vmem>>, vector<256x256xbf16>
    %cst_13 = arith.constant dense<0.000000e+00> : vector<8x256xf32>
    %21 = tpu.matmul %19, %20, %cst_13 {dimension_numbers = #tpu.dot_dimension_numbers<[1], [0], [0], [1], [0, 0, 1, 1], [], []>} : vector<8x256xbf16>, vector<256x256xbf16>, vector<8x256xf32> -> vector<8x256xf32>
    %c2 = arith.constant 2 : index
    %c0_14 = arith.constant 0 : index
    %22 = vector.load %arg5[%c2, %c0_14] : memref<3x256xf32, #tpu.memory_space<vmem>>, vector<1x256xf32>
    %23 = vector.broadcast %22 : vector<1x256xf32> to vector<8x256xf32>
    %24 = arith.addf %21, %23 : vector<8x256xf32>
    %25 = vector.extract_strided_slice %24 {offsets = [0, 0], sizes = [8, 16], strides = [1, 1]} : vector<8x256xf32> to vector<8x16xf32>
    %26 = vector.extract_strided_slice %24 {offsets = [0, 128], sizes = [8, 16], strides = [1, 1]} : vector<8x256xf32> to vector<8x16xf32>
    %cst_15 = arith.constant -2.000000e+01 : f32
    %cst_16 = arith.constant 2.000000e+00 : f32
    %27 = vector.broadcast %cst_15 : f32 to vector<8x16xf32>
    %28 = arith.maximumf %27, %26 : vector<8x16xf32>
    %29 = vector.broadcast %cst_16 : f32 to vector<8x16xf32>
    %30 = arith.minimumf %29, %28 : vector<8x16xf32>
    %31 = math.exp %30 : vector<8x16xf32>
    %cst_17 = arith.constant 9.99999993E-9 : f32
    %32 = vector.broadcast %cst_17 : f32 to vector<8x16xf32>
    %33 = arith.addf %31, %32 : vector<8x16xf32>
    %34 = tpu.reciprocal %33 {approx = true} : vector<8x16xf32> -> vector<8x16xf32>
    %35 = arith.subf %2, %25 : vector<8x16xf32>
    %36 = arith.mulf %35, %34 : vector<8x16xf32>
    %37 = arith.mulf %36, %36 : vector<8x16xf32>
    %cst_18 = arith.constant 2.000000e+00 : f32
    %38 = vector.broadcast %cst_18 : f32 to vector<8x16xf32>
    %39 = arith.mulf %38, %30 : vector<8x16xf32>
    %40 = arith.addf %37, %39 : vector<8x16xf32>
    %cst_19 = arith.constant 1.83787704 : f32
    %41 = vector.broadcast %cst_19 : f32 to vector<8x16xf32>
    %42 = arith.addf %40, %41 : vector<8x16xf32>
    %cst_20 = arith.constant -5.000000e-01 : f32
    %43 = vector.broadcast %cst_20 : f32 to vector<8x16xf32>
    %44 = arith.mulf %43, %42 : vector<8x16xf32>
    %cst_21 = arith.constant dense<0.000000e+00> : vector<8xf32>
    %45 = vector.multi_reduction <add>, %44, %cst_21 [1] : vector<8x16xf32> to vector<8xf32>
    %46 = vector.shape_cast %45 : vector<8xf32> to vector<8x1xf32>
    %cst_22 = arith.constant 1.600000e+01 : f32
    %47 = vector.broadcast %cst_22 : f32 to vector<8x1xf32>
    %48 = arith.divf %46, %47 : vector<8x1xf32>
    %cst_23 = arith.constant 0.000000e+00 : f32
    %49 = vector.broadcast %cst_23 : f32 to vector<8x95xf32>
    %50 = tpu.concatenate %25, %31, %48, %49 in 1 : vector<8x16xf32>, vector<8x16xf32>, vector<8x1xf32>, vector<8x95xf32> -> vector<8x128xf32>
    %c0_24 = arith.constant 0 : index
    %c0_25 = arith.constant 0 : index
    %51 = vector.load %arg6[%c0_24, %c0_25] : memref<8x128xf32, #tpu.memory_space<vmem>>, vector<8x128xf32>
    tpu.vector_store %arg6[%c0_24, %c0_25], %50 {strides = array<i32>} : memref<8x128xf32, #tpu.memory_space<vmem>>, vector<8x128xf32>,
    return
  }
  func.func @transform_0(%arg0: i32) -> (i32, i32) {
    %c0_i32 = arith.constant 0 : i32
    %c0_i32_0 = arith.constant 0 : i32
    return %arg0, %c0_i32 : i32, i32
  }
  func.func @transform_1(%arg0: i32) -> (i32, i32) {
    %c0_i32 = arith.constant 0 : i32
    %c0_i32_0 = arith.constant 0 : i32
    %c0_i32_1 = arith.constant 0 : i32
    return %c0_i32, %c0_i32_0 : i32, i32
  }
  func.func @transform_2(%arg0: i32) -> (i32, i32) {
    %c0_i32 = arith.constant 0 : i32
    %c0_i32_0 = arith.constant 0 : i32
    %c0_i32_1 = arith.constant 0 : i32
    return %c0_i32, %c0_i32_0 : i32, i32
  }
  func.func @transform_3(%arg0: i32) -> (i32, i32) {
    %c0_i32 = arith.constant 0 : i32
    %c0_i32_0 = arith.constant 0 : i32
    %c0_i32_1 = arith.constant 0 : i32
    return %c0_i32, %c0_i32_0 : i32, i32
  }
  func.func @transform_4(%arg0: i32) -> (i32, i32) {
    %c0_i32 = arith.constant 0 : i32
    %c0_i32_0 = arith.constant 0 : i32
    %c0_i32_1 = arith.constant 0 : i32
    return %c0_i32, %c0_i32_0 : i32, i32
  }
  func.func @transform_5(%arg0: i32) -> (i32, i32) {
    %c0_i32 = arith.constant 0 : i32
    %c0_i32_0 = arith.constant 0 : i32
    return %arg0, %c0_i32 : i32, i32
  }
}

</mosaic_0001>

<llo_original>
// kernel: tpu_custom_call.1
$region0: #{tpu_custom_call.1}
  #allocation0 [shape = 'u32[]', space=smem, size = 0x4, offset = 0x4, fixed_abs, tag = 'smem constant byte address 0x4 - core index']
  #allocation1 [shape = 'u32[144,128]{1,0:T(1,128)}', space=vmem, size = 0x12000, scoped, tag = 'internal scratch']
  %s0 = inlined_call_operand.hbm [shape: f32[8,256], index: 0, kind: input, shape index: {}]
  %s1 = inlined_call_operand.hbm [shape: bf16[32,256], index: 1, kind: input, shape index: {}]
  %s2 = inlined_call_operand.hbm [shape: bf16[256,256], index: 2, kind: input, shape index: {}]
  %s3 = inlined_call_operand.hbm [shape: bf16[256,256], index: 3, kind: input, shape index: {}]
  %s4 = inlined_call_operand.hbm [shape: f32[3,256], index: 4, kind: input, shape index: {}]
  %s5 = inlined_call_operand.hbm [shape: f32[8,128], index: 5, kind: output, shape index: {}]
  %s6 = sld [smem:[#allocation0]]
  $region50: #{tpu_custom_call.1} parent=0
    _
  %s8 = ssub.s32 1, %s6
  %s9 = scalar_select 0, %s8, %s6
  $region1: #{tpu_custom_call.1} parent=0
    #allocation2 [shape = 'u8[8192]{0}', space=vmem, size = 0x2000, scoped, tag = 'input window, operand 0, single buffered']
    #allocation3 [shape = 's32[1]{0}', space=sflag, size = 0x4, scoped, tag = 'scoped memory for tpu_custom_call.1']
    #allocation4 [shape = 's32[1]{0}', space=sflag, size = 0x4, scoped, tag = 'scoped memory for tpu_custom_call.1']
    #allocation5 [shape = 'u8[16384]{0}', space=vmem, size = 0x4000, scoped, tag = 'input window, operand 1, single buffered']
    #allocation6 [shape = 's32[1]{0}', space=sflag, size = 0x4, scoped, tag = 'scoped memory for tpu_custom_call.1']
    #allocation7 [shape = 'u8[131072]{0}', space=vmem, size = 0x20000, scoped, tag = 'input window, operand 2, single buffered']
    #allocation8 [shape = 'u8[131072]{0}', space=vmem, size = 0x20000, scoped, tag = 'input window, operand 3, single buffered']
    #allocation9 [shape = 's32[1]{0}', space=sflag, size = 0x4, scoped, tag = 'scoped memory for tpu_custom_call.1']
    #allocation10 [shape = 'u8[4096]{0}', space=vmem, size = 0x1000, scoped, tag = 'input window, operand 4, single buffered']
    #allocation11 [shape = 'u8[4096]{0}', space=vmem, size = 0x1000, scoped, tag = 'output window, operand 0, single buffered']
    %10 = vsyncpa [#allocation3], 0
    %11 = vsyncpa [#allocation6], 0
    %12 = vsyncpa [#allocation9], 0
    %13 = vsyncpa [#allocation4], 0
    // Predicated region
    $region2: #{tpu_custom_call.1} parent=1 // pred_check
      _
    $region3: #{tpu_custom_call.1} parent=1 // pred_check_branch
      %15 = sbr.rel (0) target = $region5
    $region4: #{tpu_custom_call.1} parent=1 // pred_region
      %s17 = ssub.s32 256, 256
      %18 = vsyncadd [#allocation3], %s17
      %s20 = sshll.u32 [#allocation2], 4
      %s21 = int_to_ptr.vmem [resolvable:$true] %s20
      %23 = dma.hbm_to_vmem [thread:$0]  %s0, 256, %s21, [#allocation3]
    $region5: #{tpu_custom_call.1} parent=1 // pred_fallthru
      _
    // Predicated region
    $region6: #{tpu_custom_call.1} parent=1 // pred_check
      _
    $region7: #{tpu_custom_call.1} parent=1 // pred_check_branch
      %25 = sbr.rel (0) target = $region9
    $region8: #{tpu_custom_call.1} parent=1 // pred_region
      %s27 = ssub.s32 512, 512
      %28 = vsyncadd [#allocation6], %s27
      %s29 = sshll.u32 [#allocation5], 4
      %s30 = int_to_ptr.vmem [resolvable:$true] %s29
      %35 = dma.hbm_to_vmem [thread:$0]  %s1, 512, %s30, [#allocation6], 128, 128, 8
    $region9: #{tpu_custom_call.1} parent=1 // pred_fallthru
      _
    // Predicated region
    $region10: #{tpu_custom_call.1} parent=1 // pred_check
      _
    $region11: #{tpu_custom_call.1} parent=1 // pred_check_branch
      %37 = sbr.rel (0) target = $region13
    $region12: #{tpu_custom_call.1} parent=1 // pred_region
      %s39 = ssub.s32 4096, 4096
      %40 = vsyncadd [#allocation6], %s39
      %s41 = sshll.u32 [#allocation7], 4
      %s42 = int_to_ptr.vmem [resolvable:$true] %s41
      %47 = dma.hbm_to_vmem [thread:$0]  %s2, 4096, %s42, [#allocation6], 128, 128, 8
    $region13: #{tpu_custom_call.1} parent=1 // pred_fallthru
      _
    // Predicated region
    $region14: #{tpu_custom_call.1} parent=1 // pred_check
      _
    $region15: #{tpu_custom_call.1} parent=1 // pred_check_branch
      %49 = sbr.rel (0) target = $region17
    $region16: #{tpu_custom_call.1} parent=1 // pred_region
      %s51 = ssub.s32 4096, 4096
      %52 = vsyncadd [#allocation9], %s51
      %s53 = sshll.u32 [#allocation8], 4
      %s54 = int_to_ptr.vmem [resolvable:$true] %s53
      %59 = dma.hbm_to_vmem [thread:$0]  %s3, 4096, %s54, [#allocation9], 128, 128, 8
    $region17: #{tpu_custom_call.1} parent=1 // pred_fallthru
      _
    // Predicated region
    $region18: #{tpu_custom_call.1} parent=1 // pred_check
      _
    $region19: #{tpu_custom_call.1} parent=1 // pred_check_branch
      %61 = sbr.rel (0) target = $region21
    $region20: #{tpu_custom_call.1} parent=1 // pred_region
      %s63 = ssub.s32 128, 128
      %64 = vsyncadd [#allocation9], %s63
      %s66 = sshll.u32 [#allocation10], 4
      %s67 = int_to_ptr.vmem [resolvable:$true] %s66
      %69 = dma.hbm_to_vmem [thread:$0]  %s4, 128, %s67, [#allocation9]
    $region21: #{tpu_custom_call.1} parent=1 // pred_fallthru
      _
    // Predicated region
    $region22: #{tpu_custom_call.1} parent=1 // pred_check
      _
    $region23: #{tpu_custom_call.1} parent=1 // pred_check_branch
      %71 = sbr.rel (0) target = $region25
    $region24: #{tpu_custom_call.1} parent=1 // pred_region
      %72 = dma.done [#allocation3], 256
    $region25: #{tpu_custom_call.1} parent=1 // pred_fallthru
      _
    // Predicated region
    $region26: #{tpu_custom_call.1} parent=1 // pred_check
      _
    $region27: #{tpu_custom_call.1} parent=1 // pred_check_branch
      %74 = sbr.rel (0) target = $region29
    $region28: #{tpu_custom_call.1} parent=1 // pred_region
      %75 = dma.done [#allocation6], 512
    $region29: #{tpu_custom_call.1} parent=1 // pred_fallthru
      _
    // Predicated region
    $region30: #{tpu_custom_call.1} parent=1 // pred_check
      _
    $region31: #{tpu_custom_call.1} parent=1 // pred_check_branch
      %77 = sbr.rel (0) target = $region33
    $region32: #{tpu_custom_call.1} parent=1 // pred_region
      %78 = dma.done [#allocation6], 4096
    $region33: #{tpu_custom_call.1} parent=1 // pred_fallthru
      _
    // Predicated region
    $region34: #{tpu_custom_call.1} parent=1 // pred_check
      _
    $region35: #{tpu_custom_call.1} parent=1 // pred_check_branch
      %80 = sbr.rel (0) target = $region37
    $region36: #{tpu_custom_call.1} parent=1 // pred_region
      %81 = dma.done [#allocation9], 4096
    $region37: #{tpu_custom_call.1} parent=1 // pred_fallthru
      _
    // Predicated region
    $region38: #{tpu_custom_call.1} parent=1 // pred_check
      _
    $region39: #{tpu_custom_call.1} parent=1 // pred_check_branch
      %83 = sbr.rel (0) target = $region41
    $region40: #{tpu_custom_call.1} parent=1 // pred_region
      %84 = dma.done [#allocation9], 128
    $region41: #{tpu_custom_call.1} parent=1 // pred_fallthru
      _
    %v86 = vld [vmem:[#allocation2] sm:$0xff]
    %v87 = vld [vmem:[#allocation2 + $0x8] sm:$0xff]
    %v88 = vpack.c.bf16 %v86, %v86
    %v89 = vld [vmem:[#allocation5] sm:$0xff]
    %v90 = vld [vmem:[#allocation5 + $0x8] sm:$0xff]
    %v91 = vld [vmem:[#allocation5 + $0x10] sm:$0xff]
    %v92 = vld [vmem:[#allocation5 + $0x18] sm:$0xff]
    %v93 = vld [vmem:[#allocation10] ss:$4 sm:$0x3]
    %v95 = vlaneseq
    %v96 = vshrl.u32 %v95, 7
    %v97 = vsub.s32 0, %v96
    %v98 = vrot.slane %v93, %v97
    %v99 = vlaneseq
    %v100 = vshrl.u32 %v99, 7
    %v101 = vsub.s32 1, %v100
    %v102 = vrot.slane %v93, %v101
    %v109 = vunpack.c.l.b16 %v89
    %v110 = vunpack.c.h.b16 %v89
    %v111 = vunpack.c.l.b16 %v90
    %v112 = vunpack.c.h.b16 %v90
    %v113 = vunpack.c.l.b16 %v91
    %v114 = vunpack.c.h.b16 %v91
    %v115 = vunpack.c.l.b16 %v92
    %v116 = vunpack.c.h.b16 %v92
    %v117 = vpack.c.b16 %v111, %v109
    %v118 = vpack.c.b16 %v112, %v110
    %v119 = vpack.c.b16 %v115, %v113
    %v120 = vpack.c.b16 %v116, %v114
    %vm125 = vcmask 261120
    %v127 = vsel %vm125, %v88, 0
    %129 = vmatprep.subr.bf16.mxu0 0
    %130 = vmatpush1.bf16.msra.mxu0 0
    %131 = vmatprep.subr.bf16.mxu0 0
    %132 = vmatpush1.bf16.msra.mxu0 0
    %133 = vmatprep.subr.bf16.mxu0 0
    %134 = vmatpush1.bf16.msra.mxu0 0
    %135 = vmatprep.subr.bf16.mxu0 0
    %136 = vmatpush1.bf16.msra.mxu0 0
    %137 = vmatprep.subr.bf16.mxu0 0
    %138 = vmatpush1.bf16.msra.mxu0 0
    %139 = vmatprep.subr.bf16.mxu0 0
    %140 = vmatpush1.bf16.msra.mxu0 0
    %141 = vmatprep.subr.bf16.mxu0 %v120
    %142 = vmatpush1.bf16.msra.mxu0 %v119
    %143 = vmatprep.subr.bf16.mxu0 %v118
    %144 = vmatpush1.bf16.msra.mxu0 %v117
    %145 = vmatprep.subr.bf16.mxu0 0
    %146 = vmatpush2.bf16.msra.mxu0 0
    %147 = vmatprep.subr.bf16.mxu0 0
    %148 = vmatpush2.bf16.msra.mxu0 0
    %149 = vmatprep.subr.bf16.mxu0 0
    %150 = vmatpush2.bf16.msra.mxu0 0
    %151 = vmatprep.subr.bf16.mxu0 0
    %152 = vmatpush2.bf16.msra.mxu0 0
    %153 = vmatprep.subr.bf16.mxu0 0
    %154 = vmatpush2.bf16.msra.mxu0 0
    %155 = vmatprep.subr.bf16.mxu0 0
    %156 = vmatpush2.bf16.msra.mxu0 0
    %157 = vmatprep.subr.bf16.mxu0 0
    %158 = vmatpush2.bf16.msra.mxu0 0
    %159 = vmatprep.subr.bf16.mxu0 0
    %160 = vmatpush2.bf16.msra.mxu0 0
    %161 = vmatprep.mubr.bf16.mxu0 0
    %162 = vmatmul.mubr.bf16.gmra.mxu0 %v127
    %v163 = vpop.f32.mrf.mxu0
    %v164 = vadd.f32 %v98, %v163
    %v165 = vpop.f32.mrf.mxu0
    %v166 = vadd.f32 %v102, %v165
    %v167 = vpop.f32.mrf.mxu0
    %v168 = vpop.f32.mrf.mxu0
    %169 = vdwg.mxu0
    %v170 = vmax.f32 %v164, 0.0
    %v171 = vmax.f32 %v166, 0.0
    %v172 = vpack.c.bf16 %v170, %v170
    %v173 = vpack.c.bf16 %v171, %v171
    %v174 = vld [vmem:[#allocation7] sm:$0xff]
    %v175 = vld [vmem:[#allocation7 + $0x8] sm:$0xff]
    %v176 = vld [vmem:[#allocation7 + $0x10] sm:$0xff]
    %v177 = vld [vmem:[#allocation7 + $0x18] sm:$0xff]
    %v178 = vld [vmem:[#allocation7 + $0x20] sm:$0xff]
    %v179 = vld [vmem:[#allocation7 + $0x28] sm:$0xff]
    %v180 = vld [vmem:[#allocation7 + $0x30] sm:$0xff]
    %v181 = vld [vmem:[#allocation7 + $0x38] sm:$0xff]
    %v182 = vld [vmem:[#allocation7 + $0x40] sm:$0xff]
    %v183 = vld [vmem:[#allocation7 + $0x48] sm:$0xff]
    %v184 = vld [vmem:[#allocation7 + $0x50] sm:$0xff]
    %v185 = vld [vmem:[#allocation7 + $0x58] sm:$0xff]
    %v186 = vld [vmem:[#allocation7 + $0x60] sm:$0xff]
    %v187 = vld [vmem:[#allocation7 + $0x68] sm:$0xff]
    %v188 = vld [vmem:[#allocation7 + $0x70] sm:$0xff]
    %v189 = vld [vmem:[#allocation7 + $0x78] sm:$0xff]
    %v190 = vld [vmem:[#allocation7 + $0x80] sm:$0xff]
    %v191 = vld [vmem:[#allocation7 + $0x88] sm:$0xff]
    %v192 = vld [vmem:[#allocation7 + $0x90] sm:$0xff]
    %v193 = vld [vmem:[#allocation7 + $0x98] sm:$0xff]
    %v194 = vld [vmem:[#allocation7 + $0xa0] sm:$0xff]
    %v195 = vld [vmem:[#allocation7 + $0xa8] sm:$0xff]
    %v196 = vld [vmem:[#allocation7 + $0xb0] sm:$0xff]
    %v197 = vld [vmem:[#allocation7 + $0xb8] sm:$0xff]
    %v198 = vld [vmem:[#allocation7 + $0xc0] sm:$0xff]
    %v199 = vld [vmem:[#allocation7 + $0xc8] sm:$0xff]
    %v200 = vld [vmem:[#allocation7 + $0xd0] sm:$0xff]
    %v201 = vld [vmem:[#allocation7 + $0xd8] sm:$0xff]
    %v202 = vld [vmem:[#allocation7 + $0xe0] sm:$0xff]
    %v203 = vld [vmem:[#allocation7 + $0xe8] sm:$0xff]
    %v204 = vld [vmem:[#allocation7 + $0xf0] sm:$0xff]
    %v205 = vld [vmem:[#allocation7 + $0xf8] sm:$0xff]
    %s206 = scalar_lea.vmem [#allocation10], 1
    %v207 = vld [vmem:[%s206] ss:$4 sm:$0x3]
    %v209 = vlaneseq
    %v210 = vshrl.u32 %v209, 7
    %v211 = vsub.s32 0, %v210
    %v212 = vrot.slane %v207, %v211
    %v213 = vlaneseq
    %v214 = vshrl.u32 %v213, 7
    %v215 = vsub.s32 1, %v214
    %v216 = vrot.slane %v207, %v215
    %v251 = vunpack.c.l.b16 %v174
    %v252 = vunpack.c.h.b16 %v174
    %v253 = vunpack.c.l.b16 %v175
    %v254 = vunpack.c.h.b16 %v175
    %v255 = vunpack.c.l.b16 %v176
    %v256 = vunpack.c.h.b16 %v176
    %v257 = vunpack.c.l.b16 %v177
    %v258 = vunpack.c.h.b16 %v177
    %v259 = vunpack.c.l.b16 %v178
    %v260 = vunpack.c.h.b16 %v178
    %v261 = vunpack.c.l.b16 %v179
    %v262 = vunpack.c.h.b16 %v179
    %v263 = vunpack.c.l.b16 %v180
    %v264 = vunpack.c.h.b16 %v180
    %v265 = vunpack.c.l.b16 %v181
    %v266 = vunpack.c.h.b16 %v181
    %v267 = vunpack.c.l.b16 %v182
    %v268 = vunpack.c.h.b16 %v182
    %v269 = vunpack.c.l.b16 %v183
    %v270 = vunpack.c.h.b16 %v183
    %v271 = vunpack.c.l.b16 %v184
    %v272 = vunpack.c.h.b16 %v184
    %v273 = vunpack.c.l.b16 %v185
    %v274 = vunpack.c.h.b16 %v185
    %v275 = vunpack.c.l.b16 %v186
    %v276 = vunpack.c.h.b16 %v186
    %v277 = vunpack.c.l.b16 %v187
    %v278 = vunpack.c.h.b16 %v187
    %v279 = vunpack.c.l.b16 %v188
    %v280 = vunpack.c.h.b16 %v188
    %v281 = vunpack.c.l.b16 %v189
    %v282 = vunpack.c.h.b16 %v189
    %v283 = vunpack.c.l.b16 %v190
    %v284 = vunpack.c.h.b16 %v190
    %v285 = vunpack.c.l.b16 %v191
    %v286 = vunpack.c.h.b16 %v191
    %v287 = vunpack.c.l.b16 %v192
    %v288 = vunpack.c.h.b16 %v192
    %v289 = vunpack.c.l.b16 %v193
    %v290 = vunpack.c.h.b16 %v193
    %v291 = vunpack.c.l.b16 %v194
    %v292 = vunpack.c.h.b16 %v194
    %v293 = vunpack.c.l.b16 %v195
    %v294 = vunpack.c.h.b16 %v195
    %v295 = vunpack.c.l.b16 %v196
    %v296 = vunpack.c.h.b16 %v196
    %v297 = vunpack.c.l.b16 %v197
    %v298 = vunpack.c.h.b16 %v197
    %v299 = vunpack.c.l.b16 %v198
    %v300 = vunpack.c.h.b16 %v198
    %v301 = vunpack.c.l.b16 %v199
    %v302 = vunpack.c.h.b16 %v199
    %v303 = vunpack.c.l.b16 %v200
    %v304 = vunpack.c.h.b16 %v200
    %v305 = vunpack.c.l.b16 %v201
    %v306 = vunpack.c.h.b16 %v201
    %v307 = vunpack.c.l.b16 %v202
    %v308 = vunpack.c.h.b16 %v202
    %v309 = vunpack.c.l.b16 %v203
    %v310 = vunpack.c.h.b16 %v203
    %v311 = vunpack.c.l.b16 %v204
    %v312 = vunpack.c.h.b16 %v204
    %v313 = vunpack.c.l.b16 %v205
    %v314 = vunpack.c.h.b16 %v205
    %v315 = vpack.c.b16 %v253, %v251
    %v316 = vpack.c.b16 %v254, %v252
    %v317 = vpack.c.b16 %v257, %v255
    %v318 = vpack.c.b16 %v258, %v256
    %v319 = vpack.c.b16 %v261, %v259
    %v320 = vpack.c.b16 %v262, %v260
    %v321 = vpack.c.b16 %v265, %v263
    %v322 = vpack.c.b16 %v266, %v264
    %v323 = vpack.c.b16 %v269, %v267
    %v324 = vpack.c.b16 %v270, %v268
    %v325 = vpack.c.b16 %v273, %v271
    %v326 = vpack.c.b16 %v274, %v272
    %v327 = vpack.c.b16 %v277, %v275
    %v328 = vpack.c.b16 %v278, %v276
    %v329 = vpack.c.b16 %v281, %v279
    %v330 = vpack.c.b16 %v282, %v280
    %v331 = vpack.c.b16 %v285, %v283
    %v332 = vpack.c.b16 %v286, %v284
    %v333 = vpack.c.b16 %v289, %v287
    %v334 = vpack.c.b16 %v290, %v288
    %v335 = vpack.c.b16 %v293, %v291
    %v336 = vpack.c.b16 %v294, %v292
    %v337 = vpack.c.b16 %v297, %v295
    %v338 = vpack.c.b16 %v298, %v296
    %v339 = vpack.c.b16 %v301, %v299
    %v340 = vpack.c.b16 %v302, %v300
    %v341 = vpack.c.b16 %v305, %v303
    %v342 = vpack.c.b16 %v306, %v304
    %v343 = vpack.c.b16 %v309, %v307
    %v344 = vpack.c.b16 %v310, %v308
    %v345 = vpack.c.b16 %v313, %v311
    %v346 = vpack.c.b16 %v314, %v312
    %379 = vmatprep.subr.bf16.mxu0 %v330
    %380 = vmatpush1.bf16.msra.mxu0 %v329
    %381 = vmatprep.subr.bf16.mxu0 %v328
    %382 = vmatpush1.bf16.msra.mxu0 %v327
    %383 = vmatprep.subr.bf16.mxu0 %v326
    %384 = vmatpush1.bf16.msra.mxu0 %v325
    %385 = vmatprep.subr.bf16.mxu0 %v324
    %386 = vmatpush1.bf16.msra.mxu0 %v323
    %387 = vmatprep.subr.bf16.mxu0 %v322
    %388 = vmatpush1.bf16.msra.mxu0 %v321
    %389 = vmatprep.subr.bf16.mxu0 %v320
    %390 = vmatpush1.bf16.msra.mxu0 %v319
    %391 = vmatprep.subr.bf16.mxu0 %v318
    %392 = vmatpush1.bf16.msra.mxu0 %v317
    %393 = vmatprep.subr.bf16.mxu0 %v316
    %394 = vmatpush1.bf16.msra.mxu0 %v315
    %395 = vmatprep.subr.bf16.mxu0 %v346
    %396 = vmatpush2.bf16.msra.mxu0 %v345
    %397 = vmatprep.subr.bf16.mxu0 %v344
    %398 = vmatpush2.bf16.msra.mxu0 %v343
    %399 = vmatprep.subr.bf16.mxu0 %v342
    %400 = vmatpush2.bf16.msra.mxu0 %v341
    %401 = vmatprep.subr.bf16.mxu0 %v340
    %402 = vmatpush2.bf16.msra.mxu0 %v339
    %403 = vmatprep.subr.bf16.mxu0 %v338
    %404 = vmatpush2.bf16.msra.mxu0 %v337
    %405 = vmatprep.subr.bf16.mxu0 %v336
    %406 = vmatpush2.bf16.msra.mxu0 %v335
    %407 = vmatprep.subr.bf16.mxu0 %v334
    %408 = vmatpush2.bf16.msra.mxu0 %v333
    %409 = vmatprep.subr.bf16.mxu0 %v332
    %410 = vmatpush2.bf16.msra.mxu0 %v331
    %411 = vmatprep.mubr.bf16.mxu0 %v173
    %412 = vmatmul.mubr.bf16.gmra.mxu0 %v172
    %v413 = vpop.f32.mrf.mxu0
    %v414 = vadd.f32 %v212, %v413
    %v415 = vpop.f32.mrf.mxu0
    %v416 = vadd.f32 %v216, %v415
    %v417 = vpop.f32.mrf.mxu0
    %v418 = vpop.f32.mrf.mxu0
    %419 = vdwg.mxu0
    %v420 = vmax.f32 %v414, 0.0
    %v421 = vmax.f32 %v416, 0.0
    %v422 = vpack.c.bf16 %v420, %v420
    %v423 = vpack.c.bf16 %v421, %v421
    %v424 = vld [vmem:[#allocation8] sm:$0xff]
    %v425 = vld [vmem:[#allocation8 + $0x8] sm:$0xff]
    %v426 = vld [vmem:[#allocation8 + $0x10] sm:$0xff]
    %v427 = vld [vmem:[#allocation8 + $0x18] sm:$0xff]
    %v428 = vld [vmem:[#allocation8 + $0x20] sm:$0xff]
    %v429 = vld [vmem:[#allocation8 + $0x28] sm:$0xff]
    %v430 = vld [vmem:[#allocation8 + $0x30] sm:$0xff]
    %v431 = vld [vmem:[#allocation8 + $0x38] sm:$0xff]
    %v432 = vld [vmem:[#allocation8 + $0x40] sm:$0xff]
    %v433 = vld [vmem:[#allocation8 + $0x48] sm:$0xff]
    %v434 = vld [vmem:[#allocation8 + $0x50] sm:$0xff]
    %v435 = vld [vmem:[#allocation8 + $0x58] sm:$0xff]
    %v436 = vld [vmem:[#allocation8 + $0x60] sm:$0xff]
    %v437 = vld [vmem:[#allocation8 + $0x68] sm:$0xff]
    %v438 = vld [vmem:[#allocation8 + $0x70] sm:$0xff]
    %v439 = vld [vmem:[#allocation8 + $0x78] sm:$0xff]
    %v440 = vld [vmem:[#allocation8 + $0x80] sm:$0xff]
    %v441 = vld [vmem:[#allocation8 + $0x88] sm:$0xff]
    %v442 = vld [vmem:[#allocation8 + $0x90] sm:$0xff]
    %v443 = vld [vmem:[#allocation8 + $0x98] sm:$0xff]
    %v444 = vld [vmem:[#allocation8 + $0xa0] sm:$0xff]
    %v445 = vld [vmem:[#allocation8 + $0xa8] sm:$0xff]
    %v446 = vld [vmem:[#allocation8 + $0xb0] sm:$0xff]
    %v447 = vld [vmem:[#allocation8 + $0xb8] sm:$0xff]
    %v448 = vld [vmem:[#allocation8 + $0xc0] sm:$0xff]
    %v449 = vld [vmem:[#allocation8 + $0xc8] sm:$0xff]
    %v450 = vld [vmem:[#allocation8 + $0xd0] sm:$0xff]
    %v451 = vld [vmem:[#allocation8 + $0xd8] sm:$0xff]
    %v452 = vld [vmem:[#allocation8 + $0xe0] sm:$0xff]
    %v453 = vld [vmem:[#allocation8 + $0xe8] sm:$0xff]
    %v454 = vld [vmem:[#allocation8 + $0xf0] sm:$0xff]
    %v455 = vld [vmem:[#allocation8 + $0xf8] sm:$0xff]
    %s456 = scalar_lea.vmem [#allocation10], 2
    %v457 = vld [vmem:[%s456] ss:$4 sm:$0x3]
    %v459 = vlaneseq
    %v460 = vshrl.u32 %v459, 7
    %v461 = vsub.s32 0, %v460
    %v462 = vrot.slane %v457, %v461
    %v463 = vlaneseq
    %v464 = vshrl.u32 %v463, 7
    %v465 = vsub.s32 1, %v464
    %v466 = vrot.slane %v457, %v465
    %v501 = vunpack.c.l.b16 %v424
    %v502 = vunpack.c.h.b16 %v424
    %v503 = vunpack.c.l.b16 %v425
    %v504 = vunpack.c.h.b16 %v425
    %v505 = vunpack.c.l.b16 %v426
    %v506 = vunpack.c.h.b16 %v426
    %v507 = vunpack.c.l.b16 %v427
    %v508 = vunpack.c.h.b16 %v427
    %v509 = vunpack.c.l.b16 %v428
    %v510 = vunpack.c.h.b16 %v428
    %v511 = vunpack.c.l.b16 %v429
    %v512 = vunpack.c.h.b16 %v429
    %v513 = vunpack.c.l.b16 %v430
    %v514 = vunpack.c.h.b16 %v430
    %v515 = vunpack.c.l.b16 %v431
    %v516 = vunpack.c.h.b16 %v431
    %v517 = vunpack.c.l.b16 %v432
    %v518 = vunpack.c.h.b16 %v432
    %v519 = vunpack.c.l.b16 %v433
    %v520 = vunpack.c.h.b16 %v433
    %v521 = vunpack.c.l.b16 %v434
    %v522 = vunpack.c.h.b16 %v434
    %v523 = vunpack.c.l.b16 %v435
    %v524 = vunpack.c.h.b16 %v435
    %v525 = vunpack.c.l.b16 %v436
    %v526 = vunpack.c.h.b16 %v436
    %v527 = vunpack.c.l.b16 %v437
    %v528 = vunpack.c.h.b16 %v437
    %v529 = vunpack.c.l.b16 %v438
    %v530 = vunpack.c.h.b16 %v438
    %v531 = vunpack.c.l.b16 %v439
    %v532 = vunpack.c.h.b16 %v439
    %v533 = vunpack.c.l.b16 %v440
    %v534 = vunpack.c.h.b16 %v440
    %v535 = vunpack.c.l.b16 %v441
    %v536 = vunpack.c.h.b16 %v441
    %v537 = vunpack.c.l.b16 %v442
    %v538 = vunpack.c.h.b16 %v442
    %v539 = vunpack.c.l.b16 %v443
    %v540 = vunpack.c.h.b16 %v443
    %v541 = vunpack.c.l.b16 %v444
    %v542 = vunpack.c.h.b16 %v444
    %v543 = vunpack.c.l.b16 %v445
    %v544 = vunpack.c.h.b16 %v445
    %v545 = vunpack.c.l.b16 %v446
    %v546 = vunpack.c.h.b16 %v446
    %v547 = vunpack.c.l.b16 %v447
    %v548 = vunpack.c.h.b16 %v447
    %v549 = vunpack.c.l.b16 %v448
    %v550 = vunpack.c.h.b16 %v448
    %v551 = vunpack.c.l.b16 %v449
    %v552 = vunpack.c.h.b16 %v449
    %v553 = vunpack.c.l.b16 %v450
    %v554 = vunpack.c.h.b16 %v450
    %v555 = vunpack.c.l.b16 %v451
    %v556 = vunpack.c.h.b16 %v451
    %v557 = vunpack.c.l.b16 %v452
    %v558 = vunpack.c.h.b16 %v452
    %v559 = vunpack.c.l.b16 %v453
    %v560 = vunpack.c.h.b16 %v453
    %v561 = vunpack.c.l.b16 %v454
    %v562 = vunpack.c.h.b16 %v454
    %v563 = vunpack.c.l.b16 %v455
    %v564 = vunpack.c.h.b16 %v455
    %v565 = vpack.c.b16 %v503, %v501
    %v566 = vpack.c.b16 %v504, %v502
    %v567 = vpack.c.b16 %v507, %v505
    %v568 = vpack.c.b16 %v508, %v506
    %v569 = vpack.c.b16 %v511, %v509
    %v570 = vpack.c.b16 %v512, %v510
    %v571 = vpack.c.b16 %v515, %v513
    %v572 = vpack.c.b16 %v516, %v514
    %v573 = vpack.c.b16 %v519, %v517
    %v574 = vpack.c.b16 %v520, %v518
    %v575 = vpack.c.b16 %v523, %v521
    %v576 = vpack.c.b16 %v524, %v522
    %v577 = vpack.c.b16 %v527, %v525
    %v578 = vpack.c.b16 %v528, %v526
    %v579 = vpack.c.b16 %v531, %v529
    %v580 = vpack.c.b16 %v532, %v530
    %v581 = vpack.c.b16 %v535, %v533
    %v582 = vpack.c.b16 %v536, %v534
    %v583 = vpack.c.b16 %v539, %v537
    %v584 = vpack.c.b16 %v540, %v538
    %v585 = vpack.c.b16 %v543, %v541
    %v586 = vpack.c.b16 %v544, %v542
    %v587 = vpack.c.b16 %v547, %v545
    %v588 = vpack.c.b16 %v548, %v546
    %v589 = vpack.c.b16 %v551, %v549
    %v590 = vpack.c.b16 %v552, %v550
    %v591 = vpack.c.b16 %v555, %v553
    %v592 = vpack.c.b16 %v556, %v554
    %v593 = vpack.c.b16 %v559, %v557
    %v594 = vpack.c.b16 %v560, %v558
    %v595 = vpack.c.b16 %v563, %v561
    %v596 = vpack.c.b16 %v564, %v562
    %629 = vmatprep.subr.bf16.mxu0 %v580
    %630 = vmatpush1.bf16.msra.mxu0 %v579
    %631 = vmatprep.subr.bf16.mxu0 %v578
    %632 = vmatpush1.bf16.msra.mxu0 %v577
    %633 = vmatprep.subr.bf16.mxu0 %v576
    %634 = vmatpush1.bf16.msra.mxu0 %v575
    %635 = vmatprep.subr.bf16.mxu0 %v574
    %636 = vmatpush1.bf16.msra.mxu0 %v573
    %637 = vmatprep.subr.bf16.mxu0 %v572
    %638 = vmatpush1.bf16.msra.mxu0 %v571
    %639 = vmatprep.subr.bf16.mxu0 %v570
    %640 = vmatpush1.bf16.msra.mxu0 %v569
    %641 = vmatprep.subr.bf16.mxu0 %v568
    %642 = vmatpush1.bf16.msra.mxu0 %v567
    %643 = vmatprep.subr.bf16.mxu0 %v566
    %644 = vmatpush1.bf16.msra.mxu0 %v565
    %645 = vmatprep.subr.bf16.mxu0 %v596
    %646 = vmatpush2.bf16.msra.mxu0 %v595
    %647 = vmatprep.subr.bf16.mxu0 %v594
    %648 = vmatpush2.bf16.msra.mxu0 %v593
    %649 = vmatprep.subr.bf16.mxu0 %v592
    %650 = vmatpush2.bf16.msra.mxu0 %v591
    %651 = vmatprep.subr.bf16.mxu0 %v590
    %652 = vmatpush2.bf16.msra.mxu0 %v589
    %653 = vmatprep.subr.bf16.mxu0 %v588
    %654 = vmatpush2.bf16.msra.mxu0 %v587
    %655 = vmatprep.subr.bf16.mxu0 %v586
    %656 = vmatpush2.bf16.msra.mxu0 %v585
    %657 = vmatprep.subr.bf16.mxu0 %v584
    %658 = vmatpush2.bf16.msra.mxu0 %v583
    %659 = vmatprep.subr.bf16.mxu0 %v582
    %660 = vmatpush2.bf16.msra.mxu0 %v581
    %661 = vmatprep.mubr.bf16.mxu0 %v423
    %662 = vmatmul.mubr.bf16.gmra.mxu0 %v422
    %v663 = vpop.f32.mrf.mxu0
    %v664 = vadd.f32 %v462, %v663
    %v665 = vpop.f32.mrf.mxu0
    %v666 = vadd.f32 %v466, %v665
    %v667 = vpop.f32.mrf.mxu0
    %v668 = vpop.f32.mrf.mxu0
    %669 = vdwg.mxu0
    %v670 = vmax.f32 %v666, -20.0
    %v671 = vmin.f32 %v670, 2.0
    %v672 = vmul.f32 %v671, 1.442695
    %v673 = vpow.pop %v672
    %v674 = vadd.f32 %v673, 1e-08
    %v675 = vrcp.pop %v674
    %v676 = vsub.f32 %v87, %v664
    %v677 = vmul.f32 %v676, %v675
    %v678 = vmul.f32 %v677, %v677
    %v679 = vmul.f32 %v671, 2.0
    %v680 = vadd.f32 %v678, %v679
    %v681 = vadd.f32 %v680, 1.837877
    %v682 = vmul.f32 %v681, -0.5
    %vm683 = vcmask 130048
    %v684 = vsel %vm683, %v682, 0.0
    %685 = vadd.xlane.f32.xlu0 %v684
    %v686 = vpop.xlane.xlu0 %685
    %v687 = vrcp.pop 16.0
    %v688 = vmul.f32 %v686, %v687
    %690 = vrot.lane.b32.xlu0 %v673, 16
    %v691 = vpop.permute.xlu0 %690
    %v693 = vsel %vm683, %v664, %v691
    %v694 = vsel %vm125, %v693, %v688
    %vm695 = vcmask 269312
    %v696 = vsel %vm695, %v694, 0.0
    %697 = vst [vmem:[#allocation11] sm:$0xff] %v696
    // Predicated region
    $region42: #{tpu_custom_call.1} parent=1 // pred_check
      _
    $region43: #{tpu_custom_call.1} parent=1 // pred_check_branch
      %699 = sbr.rel (0) target = $region45
    $region44: #{tpu_custom_call.1} parent=1 // pred_region
      %s701 = ssub.s32 128, 128
      %702 = vsyncadd [#allocation4], %s701
      %s704 = sshll.u32 [#allocation11], 4
      %s705 = int_to_ptr.vmem [resolvable:$true] %s704
      %707 = dma.vmem_to_hbm [thread:$0]  %s705, 128, %s5, [#allocation4]
    $region45: #{tpu_custom_call.1} parent=1 // pred_fallthru
      _
    // Predicated region
    $region46: #{tpu_custom_call.1} parent=1 // pred_check
      _
    $region47: #{tpu_custom_call.1} parent=1 // pred_check_branch
      %709 = sbr.rel (0) target = $region49
    $region48: #{tpu_custom_call.1} parent=1 // pred_region
      %710 = dma.done [#allocation4], 128
    $region49: #{tpu_custom_call.1} parent=1 // pred_fallthru
      _
    %711 = vsyncpa [#allocation3], 1
    %712 = vsyncpa [#allocation6], 1
    %713 = vsyncpa [#allocation9], 1
    %714 = vsyncpa [#allocation4], 1

</llo_original>
